<compile_context>
chip_gen: v7x
topology: tpu7x:2x2x1
jax: 0.10.0
libtpu: 0.0.40
codegen_flags: <defaults>
</compile_context>

<pallas_src>
import math

import jax
import jax.numpy as jnp
from jax.experimental import pallas as pl
from jax.experimental.pallas import tpu as pltpu

# Padded, vreg-aligned hidden/output widths (hidden 24 -> 128, out 3 -> 128).
HID_P = 128
OUT_P = 128

# Parameter-slab row layout (all rows are 128 lanes wide, f32):
#   [0, 128)     W1p  (in rows 0..in_size-1 real, rest zero)  x (HID_P lanes)
#   [128, 256)   W2p  (HID_P, HID_P)
#   [256, 384)   W3p  (HID_P, OUT_P)
#   384          b1p  (1, HID_P)      -- 8-row aligned
#   392          b2p  (1, HID_P)      -- 8-row aligned
#   400          b3p  (1, OUT_P)      -- 8-row aligned
#   [401, 408)   zero padding (sublane multiple)
_W1_OFF = 0
_W2_OFF = 128
_W3_OFF = 256
_B1_ROW = 384
_B2_ROW = 392
_B3_ROW = 400
SLAB_ROWS = 408

# Below this batch size the plain fused jnp forward beats kernel dispatch.
PALLAS_MIN_BATCH = 512


def mlp_kernel(x_ref, p_ref, o_ref):
    """Fused 3-layer MLP on one batch tile; weight slab is VMEM-resident."""
    in_size = x_ref.shape[-1]       # true feature width (4 for Iris)
    out_size = o_ref.shape[-1]      # true logit width   (3 for Iris)

    x = x_ref[...]                                     # (TB, in_size)
    w1 = p_ref[_W1_OFF:_W1_OFF + in_size, :]           # (in_size, HID_P)
    w2 = p_ref[_W2_OFF:_W2_OFF + HID_P, :]             # (HID_P, HID_P)
    w3 = p_ref[_W3_OFF:_W3_OFF + HID_P, :]             # (HID_P, OUT_P)
    b1 = p_ref[_B1_ROW:_B1_ROW + 1, :]                 # (1, HID_P)
    b2 = p_ref[_B2_ROW:_B2_ROW + 1, :]                 # (1, HID_P)
    b3 = p_ref[_B3_ROW:_B3_ROW + 1, :]                 # (1, OUT_P)

    h1 = jnp.maximum(jnp.dot(x, w1, preferred_element_type=jnp.float32) + b1, 0.0)
    h2 = jnp.maximum(jnp.dot(h1, w2, preferred_element_type=jnp.float32) + b2, 0.0)
    y = jnp.dot(h2, w3, preferred_element_type=jnp.float32) + b3    # (TB, OUT_P)
    # Padded output columns are exactly zero; store only the real logits.
    o_ref[...] = y[:, :out_size]                        # (TB, out_size)


def pack_params(params):
    """Zero-pad weights/biases into one (SLAB_ROWS, 128) slab. Called once."""
    in_size = params["w1"].shape[0]
    hid = params["w1"].shape[1]
    out_size = params["w3"].shape[1]

    slab = jnp.zeros((SLAB_ROWS, 128), jnp.float32)
    slab = slab.at[_W1_OFF:_W1_OFF + in_size, :hid].set(params["w1"])
    slab = slab.at[_W2_OFF:_W2_OFF + hid, :hid].set(params["w2"])
    slab = slab.at[_W3_OFF:_W3_OFF + hid, :out_size].set(params["w3"])
    slab = slab.at[_B1_ROW, :hid].set(params["b1"].reshape(-1))
    slab = slab.at[_B2_ROW, :hid].set(params["b2"].reshape(-1))
    slab = slab.at[_B3_ROW, :out_size].set(params["b3"].reshape(-1))
    return slab


def _pick_batch_tile(batch):
    """Batch tile: big tiles for big batches, >=2 grid steps when B >= 16."""
    if batch >= 4096:
        return 2048
    if batch >= 2048:
        return 1024
    # Two tiles (keeps both v7x TensorCores busy); multiple of 8 sublanes.
    return max(8, 8 * math.ceil(batch / 16))


def _jnp_forward(x, params):
    """Plain fused forward for tiny batches (dispatch-overhead regime)."""
    h1 = jnp.maximum(x @ params["w1"] + params["b1"], 0.0)
    h2 = jnp.maximum(h1 @ params["w2"] + params["b2"], 0.0)
    return h2 @ params["w3"] + params["b3"]


def _pallas_forward(x, slab, out_size):
    """Pallas-backed forward; x is (B, F) float32, slab is the packed params."""
    B, F = x.shape
    x = x.astype(jnp.float32)

    TB = _pick_batch_tile(B)
    num_tiles = (B + TB - 1) // TB
    Bp = TB * num_tiles
    if Bp != B:
        # Pad only batch rows (16 B/row); padded rows are dropped below.
        x = jnp.pad(x, ((0, Bp - B), (0, 0)))

    out = pl.pallas_call(
        mlp_kernel,
        out_shape=jax.ShapeDtypeStruct((Bp, out_size), jnp.float32),
        grid=(num_tiles,),
        in_specs=[
            # True feature width: last dim == full array dim -> legal block.
            pl.BlockSpec((TB, F), lambda i: (i, 0)),
            # Constant index_map -> slab DMA'd once, stays VMEM-resident.
            pl.BlockSpec((SLAB_ROWS, 128), lambda i: (0, 0)),
        ],
        out_specs=pl.BlockSpec((TB, out_size), lambda i: (i, 0)),
        compiler_params=pltpu.CompilerParams(
            dimension_semantics=("parallel",)),
    )(x, slab)

    return out[:B] if Bp != B else out


class PallasNetwork:
    """Iris MLP: Linear(in,24) -> ReLU -> Linear(24,24) -> ReLU -> Linear(24,out)."""

    def __init__(self, key, input_size, output_size):
        self.input_size = input_size
        self.output_size = output_size
        self.params = init_params(key, input_size, output_size)
        # Pack/pad the parameters ONCE (hoisted out of the per-call path).
        self.slab = pack_params(self.params)

    def __call__(self, x, use_pallas=None):
        B = x.shape[0]
        if use_pallas is None:
            use_pallas = B >= PALLAS_MIN_BATCH
        if not use_pallas:
            return _jnp_forward(x.astype(jnp.float32), self.params)
        return _pallas_forward(x, self.slab, self.output_size)


def init_params(key, input_size, output_size):
    """Deterministic init mimicking torch.nn.Linear default:
    U(-1/sqrt(fan_in), 1/sqrt(fan_in)) for both weight and bias."""
    def linear(k, fan_in, fan_out):
        kw, kb = jax.random.split(k)
        bound = 1.0 / jnp.sqrt(float(fan_in))
        w = jax.random.uniform(kw, (fan_in, fan_out), jnp.float32,
                               minval=-bound, maxval=bound)
        b = jax.random.uniform(kb, (1, fan_out), jnp.float32,
                               minval=-bound, maxval=bound)
        return w, b

    k1, k2, k3 = jax.random.split(key, 3)
    w1, b1 = linear(k1, input_size, 24)
    w2, b2 = linear(k2, 24, 24)
    w3, b3 = linear(k3, 24, output_size)
    return {"w1": w1, "b1": b1, "w2": w2, "b2": b2, "w3": w3, "b3": b3}


def reference_forward(x, p):
    h1 = jnp.maximum(x @ p["w1"] + p["b1"], 0.0)
    h2 = jnp.maximum(h1 @ p["w2"] + p["b2"], 0.0)
    return h2 @ p["w3"] + p["b3"]


if __name__ == "__main__":
    input_size = 4    # Iris: 4 features
    output_size = 3   # Iris: 3 classes

    key = jax.random.PRNGKey(0)
    kx1, kx2, kp = jax.random.split(key, 3)
    net = PallasNetwork(kp, input_size, output_size)

    # Small batch, forced through the Pallas kernel (single grid step).
    x_small = jax.random.normal(kx1, (8, input_size), dtype=jnp.float32)
    y_small = jax.block_until_ready(net(x_small, use_pallas=True))
    ref_small = reference_forward(x_small, net.params)
    assert y_small.shape == (8, output_size)
    assert jnp.allclose(y_small, ref_small, atol=1e-5, rtol=1e-5)

    # Same small batch via the auto dispatch (plain-jnp fast path).
    y_fast = jax.block_until_ready(net(x_small))
    assert jnp.allclose(y_fast, ref_small, atol=1e-5, rtol=1e-5)

    # Larger batch: multi-step grid through the Pallas kernel (2 tiles of 512).
    x_big = jax.random.normal(kx2, (1024, input_size), dtype=jnp.float32)
    y_big = jax.block_until_ready(net(x_big))
    ref_big = reference_forward(x_big, net.params)
    assert y_big.shape == (1024, output_size)
    assert jnp.allclose(y_big, ref_big, atol=1e-5, rtol=1e-5)

    print("KERNEL_OK")
</pallas_src>

<mosaic_0001>
module attributes {stable_mosaic.version = 11 : i64} {
  func.func @mlp_kernel(%arg0: i32, %arg1: memref<8x4xf32, #tpu.memory_space<vmem>>, %arg2: memref<408x128xf32, #tpu.memory_space<vmem>>, %arg3: memref<8x3xf32, #tpu.memory_space<vmem>>) attributes {dimension_semantics = [#tpu.dimension_semantics<parallel>], iteration_bounds = array<i64: 1>, scalar_prefetch = 0 : i64, scratch_operands = 0 : i64, tpu.core_type = #tpu.core_type<tc>, window_params = [{transform_indices = @transform_0, window_bounds = array<i64: 8, 4>}, {pipeline_mode = #tpu.pipeline_mode<synchronous>, transform_indices = @transform_1, window_bounds = array<i64: 408, 128>}, {transform_indices = @transform_2, window_bounds = array<i64: 8, 3>}]} {
    %c0 = arith.constant 0 : index
    %c0_0 = arith.constant 0 : index
    %0 = vector.load %arg1[%c0, %c0_0] : memref<8x4xf32, #tpu.memory_space<vmem>>, vector<8x4xf32>
    %c0_1 = arith.constant 0 : index
    %c0_2 = arith.constant 0 : index
    %1 = vector.load %arg2[%c0_1, %c0_2] : memref<408x128xf32, #tpu.memory_space<vmem>>, vector<4x128xf32>
    %c128 = arith.constant 128 : index
    %c0_3 = arith.constant 0 : index
    %2 = vector.load %arg2[%c128, %c0_3] : memref<408x128xf32, #tpu.memory_space<vmem>>, vector<128x128xf32>
    %c256 = arith.constant 256 : index
    %c0_4 = arith.constant 0 : index
    %3 = vector.load %arg2[%c256, %c0_4] : memref<408x128xf32, #tpu.memory_space<vmem>>, vector<128x128xf32>
    %c384 = arith.constant 384 : index
    %c0_5 = arith.constant 0 : index
    %4 = vector.load %arg2[%c384, %c0_5] : memref<408x128xf32, #tpu.memory_space<vmem>>, vector<1x128xf32>
    %c392 = arith.constant 392 : index
    %c0_6 = arith.constant 0 : index
    %5 = vector.load %arg2[%c392, %c0_6] : memref<408x128xf32, #tpu.memory_space<vmem>>, vector<1x128xf32>
    %c400 = arith.constant 400 : index
    %c0_7 = arith.constant 0 : index
    %6 = vector.load %arg2[%c400, %c0_7] : memref<408x128xf32, #tpu.memory_space<vmem>>, vector<1x128xf32>
    %cst = arith.constant dense<0.000000e+00> : vector<8x128xf32>
    %7 = tpu.matmul %0, %1, %cst {dimension_numbers = #tpu.dot_dimension_numbers<[1], [0], [0], [1], [0, 0, 1, 1], [], []>} : vector<8x4xf32>, vector<4x128xf32>, vector<8x128xf32> -> vector<8x128xf32>
    %8 = vector.broadcast %4 : vector<1x128xf32> to vector<8x128xf32>
    %9 = arith.addf %7, %8 : vector<8x128xf32>
    %cst_8 = arith.constant 0.000000e+00 : f32
    %10 = vector.broadcast %cst_8 : f32 to vector<8x128xf32>
    %11 = arith.maximumf %9, %10 : vector<8x128xf32>
    %cst_9 = arith.constant dense<0.000000e+00> : vector<8x128xf32>
    %12 = tpu.matmul %11, %2, %cst_9 {dimension_numbers = #tpu.dot_dimension_numbers<[1], [0], [0], [1], [0, 0, 1, 1], [], []>} : vector<8x128xf32>, vector<128x128xf32>, vector<8x128xf32> -> vector<8x128xf32>
    %13 = vector.broadcast %5 : vector<1x128xf32> to vector<8x128xf32>
    %14 = arith.addf %12, %13 : vector<8x128xf32>
    %cst_10 = arith.constant 0.000000e+00 : f32
    %15 = vector.broadcast %cst_10 : f32 to vector<8x128xf32>
    %16 = arith.maximumf %14, %15 : vector<8x128xf32>
    %cst_11 = arith.constant dense<0.000000e+00> : vector<8x128xf32>
    %17 = tpu.matmul %16, %3, %cst_11 {dimension_numbers = #tpu.dot_dimension_numbers<[1], [0], [0], [1], [0, 0, 1, 1], [], []>} : vector<8x128xf32>, vector<128x128xf32>, vector<8x128xf32> -> vector<8x128xf32>
    %18 = vector.broadcast %6 : vector<1x128xf32> to vector<8x128xf32>
    %19 = arith.addf %17, %18 : vector<8x128xf32>
    %20 = vector.extract_strided_slice %19 {offsets = [0, 0], sizes = [8, 3], strides = [1, 1]} : vector<8x128xf32> to vector<8x3xf32>
    %c0_12 = arith.constant 0 : index
    %c0_13 = arith.constant 0 : index
    %21 = vector.load %arg3[%c0_12, %c0_13] : memref<8x3xf32, #tpu.memory_space<vmem>>, vector<8x3xf32>
    tpu.vector_store %arg3[%c0_12, %c0_13], %20 {strides = array<i32>} : memref<8x3xf32, #tpu.memory_space<vmem>>, vector<8x3xf32>,
    return
  }
  func.func @transform_0(%arg0: i32) -> (i32, i32) {
    %c0_i32 = arith.constant 0 : i32
    %c0_i32_0 = arith.constant 0 : i32
    return %arg0, %c0_i32 : i32, i32
  }
  func.func @transform_1(%arg0: i32) -> (i32, i32) {
    %c0_i32 = arith.constant 0 : i32
    %c0_i32_0 = arith.constant 0 : i32
    %c0_i32_1 = arith.constant 0 : i32
    return %c0_i32, %c0_i32_0 : i32, i32
  }
  func.func @transform_2(%arg0: i32) -> (i32, i32) {
    %c0_i32 = arith.constant 0 : i32
    %c0_i32_0 = arith.constant 0 : i32
    return %arg0, %c0_i32 : i32, i32
  }
}

</mosaic_0001>

<llo_original>
// kernel: tpu_custom_call.1
$region0: #{tpu_custom_call.1}
  #allocation0 [shape = 'u32[]', space=smem, size = 0x4, offset = 0x4, fixed_abs, tag = 'smem constant byte address 0x4 - core index']
  #allocation1 [shape = 'u32[144,128]{1,0:T(1,128)}', space=vmem, size = 0x12000, scoped, tag = 'internal scratch']
  %s0 = inlined_call_operand.vmem [shape: f32[8,4], index: 0, kind: input, shape index: {}]
  %s1 = inlined_call_operand.hbm [shape: f32[408,128], index: 1, kind: input, shape index: {}]
  %s2 = inlined_call_operand.vmem [shape: f32[8,3], index: 2, kind: output, shape index: {}]
  %s3 = sld [smem:[#allocation0]]
  $region22: #{tpu_custom_call.1} parent=0
    _
  %s5 = ssub.s32 1, %s3
  %s6 = scalar_select 0, %s5, %s3
  $region1: #{tpu_custom_call.1} parent=0
    #allocation2 [shape = 'u8[208896]{0}', space=vmem, size = 0x33000, scoped, tag = 'input window, operand 1, single buffered']
    #allocation3 [shape = 's32[1]{0}', space=sflag, size = 0x4, scoped, tag = 'scoped memory for tpu_custom_call.1']
    %7 = vsyncpa [#allocation3], 0
    // Predicated region
    $region2: #{tpu_custom_call.1} parent=1 // pred_check
      _
    $region3: #{tpu_custom_call.1} parent=1 // pred_check_branch
      %9 = sbr.rel (0) target = $region5
    $region4: #{tpu_custom_call.1} parent=1 // pred_region
      _
    $region5: #{tpu_custom_call.1} parent=1 // pred_fallthru
      _
    // Predicated region
    $region6: #{tpu_custom_call.1} parent=1 // pred_check
      _
    $region7: #{tpu_custom_call.1} parent=1 // pred_check_branch
      %11 = sbr.rel (0) target = $region9
    $region8: #{tpu_custom_call.1} parent=1 // pred_region
      %s13 = ssub.s32 6528, 6528
      %14 = vsyncadd [#allocation3], %s13
      %s15 = sshll.u32 [#allocation2], 4
      %s16 = int_to_ptr.vmem [resolvable:$true] %s15
      %21 = dma.hbm_to_vmem [thread:$0]  %s1, 6528, %s16, [#allocation3], 128, 128, 8
    $region9: #{tpu_custom_call.1} parent=1 // pred_fallthru
      _
    // Predicated region
    $region10: #{tpu_custom_call.1} parent=1 // pred_check
      _
    $region11: #{tpu_custom_call.1} parent=1 // pred_check_branch
      %23 = sbr.rel (0) target = $region13
    $region12: #{tpu_custom_call.1} parent=1 // pred_region
      %24 = dma.done [#allocation3], 6528
    $region13: #{tpu_custom_call.1} parent=1 // pred_fallthru
      _
    %v25 = vld [vmem:[%s0] sm:$0xff]
    %v26 = vld [vmem:[#allocation2] sm:$0xf]
    %v27 = vld [vmem:[#allocation2 + $0x80] sm:$0xff]
    %v28 = vld [vmem:[#allocation2 + $0x88] sm:$0xff]
    %v29 = vld [vmem:[#allocation2 + $0x90] sm:$0xff]
    %v30 = vld [vmem:[#allocation2 + $0x98] sm:$0xff]
    %v31 = vld [vmem:[#allocation2 + $0xa0] sm:$0xff]
    %v32 = vld [vmem:[#allocation2 + $0xa8] sm:$0xff]
    %v33 = vld [vmem:[#allocation2 + $0xb0] sm:$0xff]
    %v34 = vld [vmem:[#allocation2 + $0xb8] sm:$0xff]
    %v35 = vld [vmem:[#allocation2 + $0xc0] sm:$0xff]
    %v36 = vld [vmem:[#allocation2 + $0xc8] sm:$0xff]
    %v37 = vld [vmem:[#allocation2 + $0xd0] sm:$0xff]
    %v38 = vld [vmem:[#allocation2 + $0xd8] sm:$0xff]
    %v39 = vld [vmem:[#allocation2 + $0xe0] sm:$0xff]
    %v40 = vld [vmem:[#allocation2 + $0xe8] sm:$0xff]
    %v41 = vld [vmem:[#allocation2 + $0xf0] sm:$0xff]
    %v42 = vld [vmem:[#allocation2 + $0xf8] sm:$0xff]
    %v43 = vld [vmem:[#allocation2 + $0x100] sm:$0xff]
    %v44 = vld [vmem:[#allocation2 + $0x108] sm:$0xff]
    %v45 = vld [vmem:[#allocation2 + $0x110] sm:$0xff]
    %v46 = vld [vmem:[#allocation2 + $0x118] sm:$0xff]
    %v47 = vld [vmem:[#allocation2 + $0x120] sm:$0xff]
    %v48 = vld [vmem:[#allocation2 + $0x128] sm:$0xff]
    %v49 = vld [vmem:[#allocation2 + $0x130] sm:$0xff]
    %v50 = vld [vmem:[#allocation2 + $0x138] sm:$0xff]
    %v51 = vld [vmem:[#allocation2 + $0x140] sm:$0xff]
    %v52 = vld [vmem:[#allocation2 + $0x148] sm:$0xff]
    %v53 = vld [vmem:[#allocation2 + $0x150] sm:$0xff]
    %v54 = vld [vmem:[#allocation2 + $0x158] sm:$0xff]
    %v55 = vld [vmem:[#allocation2 + $0x160] sm:$0xff]
    %v56 = vld [vmem:[#allocation2 + $0x168] sm:$0xff]
    %v57 = vld [vmem:[#allocation2 + $0x170] sm:$0xff]
    %v58 = vld [vmem:[#allocation2 + $0x178] sm:$0xff]
    %v59 = vld [vmem:[#allocation2 + $0x180] sm:$0x1]
    %v60 = vld [vmem:[#allocation2 + $0x188] sm:$0x1]
    %v61 = vld [vmem:[#allocation2 + $0x190] sm:$0x1]
    %v62 = vlaneseq
    %v63 = vshrl.u32 %v62, 7
    %v64 = vsub.s32 0, %v63
    %v65 = vrot.slane %v59, %v64
    %vm66 = vcmask 31744
    %v68 = vsel %vm66, %v25, 0
    %vm70 = vcmask 1043456
    %v72 = vsel %vm70, %v26, 0
    %74 = vmatprep.subr.mxu0 0.0
    %75 = vmatpush1.msra.mxu0 %v72
    %76 = vmatprep.subr.mxu0 0.0
    %77 = vmatpush1.msra.mxu0 0.0
    %78 = vmatprep.subr.mxu0 0.0
    %79 = vmatpush1.msra.mxu0 0.0
    %80 = vmatprep.subr.mxu0 0.0
    %81 = vmatpush1.msra.mxu0 0.0
    %82 = vmatprep.subr.mxu0 0.0
    %83 = vmatpush1.msra.mxu0 0.0
    %84 = vmatprep.subr.mxu0 0.0
    %85 = vmatpush1.msra.mxu0 0.0
    %86 = vmatprep.subr.mxu0 0.0
    %87 = vmatpush1.msra.mxu0 0.0
    %88 = vmatprep.subr.mxu0 0.0
    %89 = vmatpush1.msra.mxu0 0.0
    %90 = vmatprep.subr.mxu0 0.0
    %91 = vmatpush1.msra.mxu0 0.0
    %92 = vmatprep.subr.mxu0 0.0
    %93 = vmatpush1.msra.mxu0 0.0
    %94 = vmatprep.subr.mxu0 0.0
    %95 = vmatpush1.msra.mxu0 0.0
    %96 = vmatprep.subr.mxu0 0.0
    %97 = vmatpush1.msra.mxu0 0.0
    %98 = vmatprep.subr.mxu0 0.0
    %99 = vmatpush1.msra.mxu0 0.0
    %100 = vmatprep.subr.mxu0 0.0
    %101 = vmatpush1.msra.mxu0 0.0
    %102 = vmatprep.subr.mxu0 0.0
    %103 = vmatpush1.msra.mxu0 0.0
    %104 = vmatprep.subr.mxu0 0.0
    %105 = vmatpush1.msra.mxu0 0.0
    %106 = vmatprep.subr.mxu0 0.0
    %107 = vmatpush1.msra.mxu0 0.0
    %108 = vmatprep.subr.mxu0 0.0
    %109 = vmatpush1.msra.mxu0 0.0
    %110 = vmatprep.subr.mxu0 0.0
    %111 = vmatpush1.msra.mxu0 0.0
    %112 = vmatprep.subr.mxu0 0.0
    %113 = vmatpush1.msra.mxu0 0.0
    %114 = vmatprep.subr.mxu0 0.0
    %115 = vmatpush1.msra.mxu0 0.0
    %116 = vmatprep.subr.mxu0 0.0
    %117 = vmatpush1.msra.mxu0 0.0
    %118 = vmatprep.subr.mxu0 0.0
    %119 = vmatpush1.msra.mxu0 0.0
    %120 = vmatprep.subr.mxu0 0.0
    %121 = vmatpush1.msra.mxu0 0.0
    %122 = vmatprep.subr.mxu0 0.0
    %123 = vmatpush1.msra.mxu0 0.0
    %124 = vmatprep.subr.mxu0 0.0
    %125 = vmatpush1.msra.mxu0 0.0
    %126 = vmatprep.subr.mxu0 0.0
    %127 = vmatpush1.msra.mxu0 0.0
    %128 = vmatprep.subr.mxu0 0.0
    %129 = vmatpush1.msra.mxu0 0.0
    %130 = vmatprep.subr.mxu0 0.0
    %131 = vmatpush1.msra.mxu0 0.0
    %132 = vmatprep.subr.mxu0 0.0
    %133 = vmatpush1.msra.mxu0 0.0
    %134 = vmatprep.subr.mxu0 0.0
    %135 = vmatpush1.msra.mxu0 0.0
    %136 = vmatprep.subr.mxu0 0.0
    %137 = vmatpush1.msra.mxu0 0.0
    %138 = vmatprep.mubr.f32.mxu0 0.0
    %139 = vmatmul.mubr.f32.gmra.mrb[0].mxu0 %v68
    %v140 = vpop.f32.mrb[0].mxu0
    %v141 = vadd.f32 %v65, %v140
    %v142 = vpop.f32.mrb[0].mxu0
    %143 = vdwg.mxu0
    %v144 = vmax.f32 %v141, 0.0
    %v145 = vlaneseq
    %v146 = vshrl.u32 %v145, 7
    %v147 = vsub.s32 0, %v146
    %v148 = vrot.slane %v60, %v147
    %149 = vmatprep.subr.mxu0 0.0
    %150 = vmatpush1.msra.mxu0 %v27
    %151 = vmatprep.subr.mxu0 0.0
    %152 = vmatpush1.msra.mxu0 %v28
    %153 = vmatprep.subr.mxu0 0.0
    %154 = vmatpush1.msra.mxu0 %v29
    %155 = vmatprep.subr.mxu0 0.0
    %156 = vmatpush1.msra.mxu0 %v30
    %157 = vmatprep.subr.mxu0 0.0
    %158 = vmatpush1.msra.mxu0 %v31
    %159 = vmatprep.subr.mxu0 0.0
    %160 = vmatpush1.msra.mxu0 %v32
    %161 = vmatprep.subr.mxu0 0.0
    %162 = vmatpush1.msra.mxu0 %v33
    %163 = vmatprep.subr.mxu0 0.0
    %164 = vmatpush1.msra.mxu0 %v34
    %165 = vmatprep.subr.mxu0 0.0
    %166 = vmatpush1.msra.mxu0 %v35
    %167 = vmatprep.subr.mxu0 0.0
    %168 = vmatpush1.msra.mxu0 %v36
    %169 = vmatprep.subr.mxu0 0.0
    %170 = vmatpush1.msra.mxu0 %v37
    %171 = vmatprep.subr.mxu0 0.0
    %172 = vmatpush1.msra.mxu0 %v38
    %173 = vmatprep.subr.mxu0 0.0
    %174 = vmatpush1.msra.mxu0 %v39
    %175 = vmatprep.subr.mxu0 0.0
    %176 = vmatpush1.msra.mxu0 %v40
    %177 = vmatprep.subr.mxu0 0.0
    %178 = vmatpush1.msra.mxu0 %v41
    %179 = vmatprep.subr.mxu0 0.0
    %180 = vmatpush1.msra.mxu0 %v42
    %181 = vmatprep.subr.mxu0 0.0
    %182 = vmatpush1.msra.mxu0 0.0
    %183 = vmatprep.subr.mxu0 0.0
    %184 = vmatpush1.msra.mxu0 0.0
    %185 = vmatprep.subr.mxu0 0.0
    %186 = vmatpush1.msra.mxu0 0.0
    %187 = vmatprep.subr.mxu0 0.0
    %188 = vmatpush1.msra.mxu0 0.0
    %189 = vmatprep.subr.mxu0 0.0
    %190 = vmatpush1.msra.mxu0 0.0
    %191 = vmatprep.subr.mxu0 0.0
    %192 = vmatpush1.msra.mxu0 0.0
    %193 = vmatprep.subr.mxu0 0.0
    %194 = vmatpush1.msra.mxu0 0.0
    %195 = vmatprep.subr.mxu0 0.0
    %196 = vmatpush1.msra.mxu0 0.0
    %197 = vmatprep.subr.mxu0 0.0
    %198 = vmatpush1.msra.mxu0 0.0
    %199 = vmatprep.subr.mxu0 0.0
    %200 = vmatpush1.msra.mxu0 0.0
    %201 = vmatprep.subr.mxu0 0.0
    %202 = vmatpush1.msra.mxu0 0.0
    %203 = vmatprep.subr.mxu0 0.0
    %204 = vmatpush1.msra.mxu0 0.0
    %205 = vmatprep.subr.mxu0 0.0
    %206 = vmatpush1.msra.mxu0 0.0
    %207 = vmatprep.subr.mxu0 0.0
    %208 = vmatpush1.msra.mxu0 0.0
    %209 = vmatprep.subr.mxu0 0.0
    %210 = vmatpush1.msra.mxu0 0.0
    %211 = vmatprep.subr.mxu0 0.0
    %212 = vmatpush1.msra.mxu0 0.0
    %213 = vmatprep.mubr.f32.mxu0 0.0
    %214 = vmatmul.mubr.f32.gmra.mrb[0].mxu0 %v144
    %v215 = vpop.f32.mrb[0].mxu0
    %v216 = vadd.f32 %v148, %v215
    %v217 = vpop.f32.mrb[0].mxu0
    %218 = vdwg.mxu0
    %v219 = vmax.f32 %v216, 0.0
    %v220 = vlaneseq
    %v221 = vshrl.u32 %v220, 7
    %v222 = vsub.s32 0, %v221
    %v223 = vrot.slane %v61, %v222
    %224 = vmatprep.subr.mxu0 0.0
    %225 = vmatpush1.msra.mxu0 %v43
    %226 = vmatprep.subr.mxu0 0.0
    %227 = vmatpush1.msra.mxu0 %v44
    %228 = vmatprep.subr.mxu0 0.0
    %229 = vmatpush1.msra.mxu0 %v45
    %230 = vmatprep.subr.mxu0 0.0
    %231 = vmatpush1.msra.mxu0 %v46
    %232 = vmatprep.subr.mxu0 0.0
    %233 = vmatpush1.msra.mxu0 %v47
    %234 = vmatprep.subr.mxu0 0.0
    %235 = vmatpush1.msra.mxu0 %v48
    %236 = vmatprep.subr.mxu0 0.0
    %237 = vmatpush1.msra.mxu0 %v49
    %238 = vmatprep.subr.mxu0 0.0
    %239 = vmatpush1.msra.mxu0 %v50
    %240 = vmatprep.subr.mxu0 0.0
    %241 = vmatpush1.msra.mxu0 %v51
    %242 = vmatprep.subr.mxu0 0.0
    %243 = vmatpush1.msra.mxu0 %v52
    %244 = vmatprep.subr.mxu0 0.0
    %245 = vmatpush1.msra.mxu0 %v53
    %246 = vmatprep.subr.mxu0 0.0
    %247 = vmatpush1.msra.mxu0 %v54
    %248 = vmatprep.subr.mxu0 0.0
    %249 = vmatpush1.msra.mxu0 %v55
    %250 = vmatprep.subr.mxu0 0.0
    %251 = vmatpush1.msra.mxu0 %v56
    %252 = vmatprep.subr.mxu0 0.0
    %253 = vmatpush1.msra.mxu0 %v57
    %254 = vmatprep.subr.mxu0 0.0
    %255 = vmatpush1.msra.mxu0 %v58
    %256 = vmatprep.subr.mxu0 0.0
    %257 = vmatpush1.msra.mxu0 0.0
    %258 = vmatprep.subr.mxu0 0.0
    %259 = vmatpush1.msra.mxu0 0.0
    %260 = vmatprep.subr.mxu0 0.0
    %261 = vmatpush1.msra.mxu0 0.0
    %262 = vmatprep.subr.mxu0 0.0
    %263 = vmatpush1.msra.mxu0 0.0
    %264 = vmatprep.subr.mxu0 0.0
    %265 = vmatpush1.msra.mxu0 0.0
    %266 = vmatprep.subr.mxu0 0.0
    %267 = vmatpush1.msra.mxu0 0.0
    %268 = vmatprep.subr.mxu0 0.0
    %269 = vmatpush1.msra.mxu0 0.0
    %270 = vmatprep.subr.mxu0 0.0
    %271 = vmatpush1.msra.mxu0 0.0
    %272 = vmatprep.subr.mxu0 0.0
    %273 = vmatpush1.msra.mxu0 0.0
    %274 = vmatprep.subr.mxu0 0.0
    %275 = vmatpush1.msra.mxu0 0.0
    %276 = vmatprep.subr.mxu0 0.0
    %277 = vmatpush1.msra.mxu0 0.0
    %278 = vmatprep.subr.mxu0 0.0
    %279 = vmatpush1.msra.mxu0 0.0
    %280 = vmatprep.subr.mxu0 0.0
    %281 = vmatpush1.msra.mxu0 0.0
    %282 = vmatprep.subr.mxu0 0.0
    %283 = vmatpush1.msra.mxu0 0.0
    %284 = vmatprep.subr.mxu0 0.0
    %285 = vmatpush1.msra.mxu0 0.0
    %286 = vmatprep.subr.mxu0 0.0
    %287 = vmatpush1.msra.mxu0 0.0
    %288 = vmatprep.mubr.f32.mxu0 0.0
    %289 = vmatmul.mubr.f32.gmra.mrb[0].mxu0 %v219
    %v290 = vpop.f32.mrb[0].mxu0
    %v291 = vadd.f32 %v223, %v290
    %v292 = vpop.f32.mrb[0].mxu0
    %293 = vdwg.mxu0
    %vm294 = vcmask 23552
    %295 = vst.msk [vmem:[%s2] sm:$0xff] %vm294, %v291
    // Predicated region
    $region14: #{tpu_custom_call.1} parent=1 // pred_check
      _
    $region15: #{tpu_custom_call.1} parent=1 // pred_check_branch
      %297 = sbr.rel (0) target = $region17
    $region16: #{tpu_custom_call.1} parent=1 // pred_region
      _
    $region17: #{tpu_custom_call.1} parent=1 // pred_fallthru
      _
    // Predicated region
    $region18: #{tpu_custom_call.1} parent=1 // pred_check
      _
    $region19: #{tpu_custom_call.1} parent=1 // pred_check_branch
      %299 = sbr.rel (0) target = $region21
    $region20: #{tpu_custom_call.1} parent=1 // pred_region
      _
    $region21: #{tpu_custom_call.1} parent=1 // pred_fallthru
      _
    %300 = vsyncpa [#allocation3], 1

</llo_original>
